<compile_context>
chip_gen: v6e
topology: v6e:2x2x1
jax: 0.10.0
libtpu: 0.0.40
codegen_flags: <defaults>
</compile_context>

<pallas_src>
import functools

import jax
import jax.numpy as jnp
from jax.experimental import pallas as pl
from jax.experimental.pallas import tpu as pltpu

_LANES = 128
_SUBLANES = 8


def _round_up(x, m):
    return ((x + m - 1) // m) * m


def _attn_kernel(x_ref, o_ref, *, n_head, d_qk, d_v, inv_scale, apply_dropout):
    x = x_ref[...].astype(jnp.float32)            # (C, TS, 128)
    ts, lanes = x.shape[1], x.shape[2]

    c_q = n_head * d_qk
    c_v = n_head * d_v
    q = x[0:c_q].reshape(n_head, d_qk, ts, lanes)                  # (H, Dq, TS, 128)
    k = x[c_q:2 * c_q].reshape(n_head, d_qk, ts, lanes)            # (H, Dq, TS, 128)
    v = x[2 * c_q:2 * c_q + c_v].reshape(n_head, d_v, ts, lanes)   # (H, Dv, TS, 128)

    # s[hq, hk] = sum_d q[hq, d] * k[hk, d]  ==  (query @ key^T)
    s = jnp.sum(q[:, None] * k[None, :], axis=2) * inv_scale       # (H, H, TS, 128)

    # softmax over the key-head axis (torch softmax(dim=-1))
    s = s - jnp.max(s, axis=1, keepdims=True)
    e = jnp.exp(s)
    # NOTE: pl.reciprocal(..., approx=True) would move the divide to the EUP
    # slot on real hardware, but its generic (interpret-mode) lowering rejects
    # approx=True, so the plain divide is kept for portability.
    p = e / jnp.sum(e, axis=1, keepdims=True)                      # (H, H, TS, 128)

    if apply_dropout:
        # keep-mask entries are 0 or 1/(1 - dropout_p), precomputed in wrapper.
        keep = x[2 * c_q + c_v:].reshape(n_head, n_head, ts, lanes)
        p = p * keep

    # out[hq, dv] = sum_hk p[hq, hk] * v[hk, dv]  ==  (softmax_qk @ value)
    out = jnp.sum(p[:, :, None] * v[None, :, :], axis=1)           # (H, Dv, TS, 128)
    o_ref[...] = out.reshape(c_v, ts, lanes).astype(o_ref.dtype)


def attention_forward(query, key, value, mask_future_positions, *,
                      hidden_size, dropout_p=0.2, training=True,
                      dropout_key=None):
    B, N, H, Dq = query.shape
    Dv = value.shape[-1]
    out_dtype = value.dtype

    if mask_future_positions:
        # Faithful to the reference: torch.triu(ones(*value.shape[:-1], 1),
        # diagonal=1) is identically zero, so output * mask == 0 exactly.
        # Short-circuit at trace time (no relayout/DMA/softmax work).
        return jnp.zeros((B, N, H, Dv), out_dtype)

    BN = B * N
    apply_dropout = bool(training) and float(dropout_p) > 0.0
    inv_scale = float(hidden_size) ** (-0.5)

    # ---- relayout: one stacked channel-major operand (C, BN) -> (C, R, 128)
    qf = query.reshape(BN, H * Dq).T.astype(jnp.float32)
    kf = key.reshape(BN, H * Dq).T.astype(jnp.float32)
    vf = value.reshape(BN, H * Dv).T.astype(jnp.float32)
    chans = [qf, kf, vf]
    if apply_dropout:
        # TODO(synk): generating the keep-mask in-kernel with pltpu.prng_seed /
        # pltpu.prng_random_bits would remove ~40% of the kernel's HBM reads,
        # but those primitives only lower on the real Mosaic backend (not in
        # interpret mode), so the mask is precomputed here with jax.random.
        # (torch's dropout RNG stream cannot be reproduced bit-for-bit anyway.)
        if dropout_key is None:
            dropout_key = jax.random.PRNGKey(0)
        u = jax.random.uniform(dropout_key, (H * H, BN), dtype=jnp.float32)
        keep = (u >= dropout_p).astype(jnp.float32) * (1.0 / (1.0 - dropout_p))
        chans.append(keep)

    x = jnp.concatenate(chans, axis=0)                             # (C, BN)
    C = x.shape[0]

    # ---- tile choice: rows of 128 lanes, multiple-of-8 sublanes, MiB-scale.
    rows = -(-BN // _LANES)
    ts = min(1024, _round_up(rows, _SUBLANES))
    n_steps = max(1, -(-rows // ts))
    if n_steps == 1 and rows >= 64:
        n_steps = 2        # keep >= 2 grid steps so v7x's 2nd TC has work
    ts = _round_up(-(-rows // n_steps), _SUBLANES)
    R = n_steps * ts
    pad = R * _LANES - BN
    x = jnp.pad(x, ((0, 0), (0, pad))).reshape(C, R, _LANES)

    kernel = functools.partial(
        _attn_kernel, n_head=H, d_qk=Dq, d_v=Dv,
        inv_scale=inv_scale, apply_dropout=apply_dropout)

    out = pl.pallas_call(
        kernel,
        grid=(R // ts,),
        in_specs=[pl.BlockSpec((C, ts, _LANES), lambda i: (0, i, 0))],
        out_specs=pl.BlockSpec((H * Dv, ts, _LANES), lambda i: (0, i, 0)),
        out_shape=jax.ShapeDtypeStruct((H * Dv, R, _LANES), out_dtype),
        compiler_params=pltpu.CompilerParams(
            dimension_semantics=("parallel",),
            vmem_limit_bytes=48 << 20),
    )(x)

    out = out.reshape(H * Dv, R * _LANES)[:, :BN]                  # (H*Dv, BN)
    return out.T.reshape(B, N, H, Dv)


if __name__ == "__main__":
    # Shapes from the module's globals.
    d_qk, d_v = 1, 1
    n_batch, n_head, n_qkv = 1, 2, 3
    dropout_p = 0.2

    # TODO(synk): the reference forward references an undefined global
    # `hidden_size`; standard attention scaling hidden_size = d_qk is assumed.
    hidden_size = d_qk

    rng = jax.random.PRNGKey(0)
    kq, kk, kv, kd = jax.random.split(rng, 4)
    query = jax.random.normal(kq, (n_batch, n_qkv, n_head, d_qk), dtype=jnp.float32)
    key_t = jax.random.normal(kk, (n_batch, n_qkv, n_head, d_qk), dtype=jnp.float32)
    value = jax.random.normal(kv, (n_batch, n_qkv, n_head, d_v), dtype=jnp.float32)

    # Pure-JAX reference pieces.
    qk = jnp.einsum('bnhd,bngd->bnhg', query, key_t) * (float(hidden_size) ** -0.5)
    softmax_qk = jax.nn.softmax(qk, axis=-1)

    # 1) Training + future-position mask (module defaults): mask is all zeros,
    #    output is exactly zero (short-circuited, no kernel work).
    out_train = attention_forward(query, key_t, value, True,
                                  hidden_size=hidden_size, dropout_p=dropout_p,
                                  training=True, dropout_key=kd)
    jax.block_until_ready(out_train)
    assert out_train.shape == (n_batch, n_qkv, n_head, d_v)
    assert out_train.dtype == jnp.float32
    assert bool(jnp.all(out_train == 0.0))

    # 2) Eval path (no dropout, no mask) vs pure-JAX reference.
    out_eval = attention_forward(query, key_t, value, False,
                                 hidden_size=hidden_size, dropout_p=dropout_p,
                                 training=False)
    ref_eval = jnp.einsum('bnhg,bngd->bnhd', softmax_qk, value)
    jax.block_until_ready(out_eval)
    assert bool(jnp.allclose(out_eval, ref_eval, atol=1e-5, rtol=1e-5))

    # 3) Training path without the (always-zero) mask: exercises the dropout
    #    multiply inside the kernel; checked against a reference built from
    #    the same deterministic keep-mask.
    out_drop = attention_forward(query, key_t, value, False,
                                 hidden_size=hidden_size, dropout_p=dropout_p,
                                 training=True, dropout_key=kd)
    BN = n_batch * n_qkv
    u = jax.random.uniform(kd, (n_head * n_head, BN), dtype=jnp.float32)
    keep = (u >= dropout_p).astype(jnp.float32) * (1.0 / (1.0 - dropout_p))
    keep_bnhh = keep.reshape(n_head, n_head, BN).transpose(2, 0, 1) \
                    .reshape(n_batch, n_qkv, n_head, n_head)
    ref_drop = jnp.einsum('bnhg,bngd->bnhd', softmax_qk * keep_bnhh, value)
    jax.block_until_ready(out_drop)
    assert bool(jnp.allclose(out_drop, ref_drop, atol=1e-5, rtol=1e-5))

    print("KERNEL_OK")
</pallas_src>

<mosaic_0001>
module attributes {stable_mosaic.version = 11 : i64} {
  func.func @_attn_kernel(%arg0: i32, %arg1: memref<6x8x128xf32, #tpu.memory_space<vmem>>, %arg2: memref<2x8x128xf32, #tpu.memory_space<vmem>>) attributes {dimension_semantics = [#tpu.dimension_semantics<parallel>], iteration_bounds = array<i64: 1>, scalar_prefetch = 0 : i64, scratch_operands = 0 : i64, tpu.core_type = #tpu.core_type<tc>, window_params = [{transform_indices = @transform_0, window_bounds = array<i64: 6, 8, 128>}, {transform_indices = @transform_1, window_bounds = array<i64: 2, 8, 128>}]} {
    %c0 = arith.constant 0 : index
    %c0_0 = arith.constant 0 : index
    %c0_1 = arith.constant 0 : index
    %0 = vector.load %arg1[%c0, %c0_0, %c0_1] : memref<6x8x128xf32, #tpu.memory_space<vmem>>, vector<6x8x128xf32>
    %1 = vector.extract_strided_slice %0 {offsets = [0, 0, 0], sizes = [2, 8, 128], strides = [1, 1, 1]} : vector<6x8x128xf32> to vector<2x8x128xf32>
    %2 = vector.shape_cast %1 : vector<2x8x128xf32> to vector<2x1x8x128xf32>
    %3 = vector.extract_strided_slice %0 {offsets = [2, 0, 0], sizes = [2, 8, 128], strides = [1, 1, 1]} : vector<6x8x128xf32> to vector<2x8x128xf32>
    %4 = vector.shape_cast %3 : vector<2x8x128xf32> to vector<2x1x8x128xf32>
    %5 = vector.extract_strided_slice %0 {offsets = [4, 0, 0], sizes = [2, 8, 128], strides = [1, 1, 1]} : vector<6x8x128xf32> to vector<2x8x128xf32>
    %6 = vector.shape_cast %5 : vector<2x8x128xf32> to vector<2x1x8x128xf32>
    %7 = vector.shape_cast %2 : vector<2x1x8x128xf32> to vector<2x1x1x8x128xf32>
    %8 = vector.shape_cast %4 : vector<2x1x8x128xf32> to vector<1x2x1x8x128xf32>
    %9 = vector.broadcast %7 : vector<2x1x1x8x128xf32> to vector<2x2x1x8x128xf32>
    %10 = vector.broadcast %8 : vector<1x2x1x8x128xf32> to vector<2x2x1x8x128xf32>
    %11 = arith.mulf %9, %10 : vector<2x2x1x8x128xf32>
    %cst = arith.constant dense<0.000000e+00> : vector<2x2x8x128xf32>
    %12 = vector.multi_reduction <add>, %11, %cst [2] : vector<2x2x1x8x128xf32> to vector<2x2x8x128xf32>
    %cst_2 = arith.constant 1.000000e+00 : f32
    %13 = vector.broadcast %cst_2 : f32 to vector<2x2x8x128xf32>
    %14 = arith.mulf %12, %13 : vector<2x2x8x128xf32>
    %cst_3 = arith.constant dense<0xFF800000> : vector<2x8x128xf32>
    %15 = vector.multi_reduction <maximumf>, %14, %cst_3 [1] : vector<2x2x8x128xf32> to vector<2x8x128xf32>
    %16 = vector.shape_cast %15 : vector<2x8x128xf32> to vector<2x1x8x128xf32>
    %17 = vector.broadcast %16 : vector<2x1x8x128xf32> to vector<2x2x8x128xf32>
    %18 = arith.subf %14, %17 : vector<2x2x8x128xf32>
    %19 = math.exp %18 : vector<2x2x8x128xf32>
    %cst_4 = arith.constant dense<0.000000e+00> : vector<2x8x128xf32>
    %20 = vector.multi_reduction <add>, %19, %cst_4 [1] : vector<2x2x8x128xf32> to vector<2x8x128xf32>
    %21 = vector.shape_cast %20 : vector<2x8x128xf32> to vector<2x1x8x128xf32>
    %22 = vector.broadcast %21 : vector<2x1x8x128xf32> to vector<2x2x8x128xf32>
    %23 = arith.divf %19, %22 : vector<2x2x8x128xf32>
    %24 = vector.shape_cast %23 : vector<2x2x8x128xf32> to vector<2x2x1x8x128xf32>
    %25 = vector.shape_cast %6 : vector<2x1x8x128xf32> to vector<1x2x1x8x128xf32>
    %26 = vector.broadcast %25 : vector<1x2x1x8x128xf32> to vector<2x2x1x8x128xf32>
    %27 = arith.mulf %24, %26 : vector<2x2x1x8x128xf32>
    %cst_5 = arith.constant dense<0.000000e+00> : vector<2x1x8x128xf32>
    %28 = vector.multi_reduction <add>, %27, %cst_5 [1] : vector<2x2x1x8x128xf32> to vector<2x1x8x128xf32>
    %29 = vector.shape_cast %28 : vector<2x1x8x128xf32> to vector<2x8x128xf32>
    %c0_6 = arith.constant 0 : index
    %c0_7 = arith.constant 0 : index
    %c0_8 = arith.constant 0 : index
    %30 = vector.load %arg2[%c0_6, %c0_7, %c0_8] : memref<2x8x128xf32, #tpu.memory_space<vmem>>, vector<2x8x128xf32>
    tpu.vector_store %arg2[%c0_6, %c0_7, %c0_8], %29 {strides = array<i32>} : memref<2x8x128xf32, #tpu.memory_space<vmem>>, vector<2x8x128xf32>,
    return
  }
  func.func @transform_0(%arg0: i32) -> (i32, i32, i32) {
    %c0_i32 = arith.constant 0 : i32
    %c0_i32_0 = arith.constant 0 : i32
    %c0_i32_1 = arith.constant 0 : i32
    return %c0_i32, %arg0, %c0_i32_0 : i32, i32, i32
  }
  func.func @transform_1(%arg0: i32) -> (i32, i32, i32) {
    %c0_i32 = arith.constant 0 : i32
    %c0_i32_0 = arith.constant 0 : i32
    %c0_i32_1 = arith.constant 0 : i32
    return %c0_i32, %arg0, %c0_i32_0 : i32, i32, i32
  }
}

</mosaic_0001>

<llo_original>
// kernel: tpu_custom_call.1
$region0: #{tpu_custom_call.1}
  #allocation0 [shape = 'u32[]', space=smem, size = 0x4, offset = 0x4, fixed_abs, tag = 'smem constant byte address 0x4 - core index']
  #allocation1 [shape = 'u32[144,128]{1,0:T(1,128)}', space=vmem, size = 0x12000, scoped, tag = 'internal scratch']
  %s0 = inlined_call_operand.hbm [shape: f32[6,8,128], index: 0, kind: input, shape index: {}]
  %s1 = inlined_call_operand.hbm [shape: f32[2,8,128], index: 1, kind: output, shape index: {}]
  %s2 = sld [smem:[#allocation0]]
  $region18: #{tpu_custom_call.1} parent=0
    _
  %s4 = ssub.s32 1, %s2
  %s5 = scalar_select 0, %s4, %s2
  $region1: #{tpu_custom_call.1} parent=0
    #allocation2 [shape = 'u8[24576]{0}', space=vmem, size = 0x6000, scoped, tag = 'input window, operand 0, single buffered']
    #allocation3 [shape = 's32[1]{0}', space=sflag, size = 0x4, scoped, tag = 'scoped memory for tpu_custom_call.1']
    #allocation4 [shape = 's32[1]{0}', space=sflag, size = 0x4, scoped, tag = 'scoped memory for tpu_custom_call.1']
    #allocation5 [shape = 'u8[8192]{0}', space=vmem, size = 0x2000, scoped, tag = 'output window, operand 0, single buffered']
    %6 = vsyncpa [#allocation3], 0
    %7 = vsyncpa [#allocation4], 0
    // Predicated region
    $region2: #{tpu_custom_call.1} parent=1 // pred_check
      _
    $region3: #{tpu_custom_call.1} parent=1 // pred_check_branch
      %9 = sbr.rel (0) target = $region5
    $region4: #{tpu_custom_call.1} parent=1 // pred_region
      %s11 = ssub.s32 768, 768
      %12 = vsyncadd [#allocation3], %s11
      %s13 = sshll.u32 [#allocation2], 4
      %s14 = int_to_ptr.vmem [resolvable:$true] %s13
      %19 = dma.hbm_to_vmem [thread:$0]  %s0, 768, %s14, [#allocation3], 128, 128, 8
    $region5: #{tpu_custom_call.1} parent=1 // pred_fallthru
      _
    // Predicated region
    $region6: #{tpu_custom_call.1} parent=1 // pred_check
      _
    $region7: #{tpu_custom_call.1} parent=1 // pred_check_branch
      %21 = sbr.rel (0) target = $region9
    $region8: #{tpu_custom_call.1} parent=1 // pred_region
      %22 = dma.done [#allocation3], 768
    $region9: #{tpu_custom_call.1} parent=1 // pred_fallthru
      _
    %v23 = vld [vmem:[#allocation2] sm:$0xff]
    %v24 = vld [vmem:[#allocation2 + $0x8] sm:$0xff]
    %v25 = vld [vmem:[#allocation2 + $0x10] sm:$0xff]
    %v26 = vld [vmem:[#allocation2 + $0x18] sm:$0xff]
    %v27 = vld [vmem:[#allocation2 + $0x20] sm:$0xff]
    %v28 = vld [vmem:[#allocation2 + $0x28] sm:$0xff]
    %v29 = vmul.f32 %v23, %v25
    %v30 = vmul.f32 %v23, %v26
    %v31 = vmul.f32 %v24, %v25
    %v32 = vmul.f32 %v24, %v26
    %v33 = vadd.f32 %v29, 0.0
    %v34 = vadd.f32 %v30, 0.0
    %v35 = vadd.f32 %v31, 0.0
    %v36 = vadd.f32 %v32, 0.0
    %v37 = vmax.f32 %v33, %v34
    %v38 = vmax.f32 %v35, %v36
    %v39 = vsub.f32 %v33, %v37
    %v40 = vsub.f32 %v34, %v37
    %v41 = vsub.f32 %v35, %v38
    %v42 = vsub.f32 %v36, %v38
    %v43 = vmul.f32 %v39, 1.442695
    %v44 = vpow.pop %v43
    %v45 = vmul.f32 %v40, 1.442695
    %v46 = vpow.pop %v45
    %v47 = vmul.f32 %v41, 1.442695
    %v48 = vpow.pop %v47
    %v49 = vmul.f32 %v42, 1.442695
    %v50 = vpow.pop %v49
    %v51 = vadd.f32 %v44, %v46
    %v52 = vadd.f32 %v48, %v50
    %v53 = vrcp.pop %v51
    %v54 = vmul.f32 %v44, %v53
    %v55 = vmul.f32 %v46, %v53
    %v56 = vrcp.pop %v52
    %v57 = vmul.f32 %v48, %v56
    %v58 = vmul.f32 %v50, %v56
    %v59 = vmul.f32 %v54, %v27
    %v60 = vmul.f32 %v55, %v28
    %v61 = vmul.f32 %v57, %v27
    %v62 = vmul.f32 %v58, %v28
    %v63 = vadd.f32 %v59, %v60
    %v64 = vadd.f32 %v61, %v62
    %65 = vst [vmem:[#allocation5] sm:$0xff] %v63
    %66 = vst [vmem:[#allocation5 + $0x8] sm:$0xff] %v64
    // Predicated region
    $region10: #{tpu_custom_call.1} parent=1 // pred_check
      _
    $region11: #{tpu_custom_call.1} parent=1 // pred_check_branch
      %68 = sbr.rel (0) target = $region13
    $region12: #{tpu_custom_call.1} parent=1 // pred_region
      %s70 = ssub.s32 256, 256
      %71 = vsyncadd [#allocation4], %s70
      %s72 = sshll.u32 [#allocation5], 4
      %s73 = int_to_ptr.vmem [resolvable:$true] %s72
      %78 = dma.vmem_to_hbm [thread:$0]  %s73, 256, %s1, [#allocation4], 128, 128, 8
    $region13: #{tpu_custom_call.1} parent=1 // pred_fallthru
      _
    // Predicated region
    $region14: #{tpu_custom_call.1} parent=1 // pred_check
      _
    $region15: #{tpu_custom_call.1} parent=1 // pred_check_branch
      %80 = sbr.rel (0) target = $region17
    $region16: #{tpu_custom_call.1} parent=1 // pred_region
      %81 = dma.done [#allocation4], 256
    $region17: #{tpu_custom_call.1} parent=1 // pred_fallthru
      _
    %82 = vsyncpa [#allocation3], 1
    %83 = vsyncpa [#allocation4], 1

</llo_original>
